<compile_context>
chip_gen: v5e
topology: v5e:2x2
jax: 0.10.0
libtpu: 0.0.40
codegen_flags: <defaults>
</compile_context>

<pallas_src>
import functools

import jax
import jax.numpy as jnp
from jax.experimental import pallas as pl
from jax.experimental.pallas import tpu as pltpu

INPUT_DIM = 113
OUTPUT_DIM = 1
DEFAULT_TB = 4096  # rows per batch tile (multiple of 8), fits v5e scoped VMEM


def _linear_rowvec_kernel(x_ref, w_ref, b_ref, o_ref):
    """out_dim == 1: VPU multiply + lane reduction, bias from SMEM scalar.

    x_ref: (TB, in_dim) VMEM tile (streamed)
    w_ref: (1, in_dim)  VMEM tile (resident across grid steps)
    b_ref: (1,)         SMEM scalar
    o_ref: (TB, 1)      VMEM tile
    """
    prod = x_ref[...] * w_ref[...]                       # VPU, broadcast row
    acc = jnp.sum(prod, axis=-1, keepdims=True)          # XLU lane reduce
    o_ref[...] = (acc + b_ref[0]).astype(o_ref.dtype)


def _linear_mxu_kernel(x_ref, wt_ref, b_ref, o_ref):
    """General out_dim > 1 path: MXU matmul y = x @ W^T + b.

    x_ref:  (TB, in_dim)       VMEM tile (streamed)
    wt_ref: (in_dim, out_dim)  VMEM tile (resident, already transposed)
    b_ref:  (1, out_dim)       VMEM tile (resident)
    o_ref:  (TB, out_dim)      VMEM tile
    """
    acc = jnp.dot(x_ref[...], wt_ref[...], preferred_element_type=jnp.float32)
    o_ref[...] = (acc + b_ref[...]).astype(o_ref.dtype)


@functools.partial(jax.jit, static_argnames=("tb",))
def linear_nn_forward(x, weight, bias, *, tb=DEFAULT_TB):
    """Pallas implementation of LinearNN.forward (single nn.Linear).

    x:      (B, input_dim) float32
    weight: (output_dim, input_dim) float32   (PyTorch convention)
    bias:   (output_dim,) float32
    returns (B, output_dim) float32
    """
    B, in_dim = x.shape
    out_dim = weight.shape[0]

    # Tile size: multiple of 8, no larger than the (8-rounded) batch.
    b8 = ((B + 7) // 8) * 8
    TB = min(tb, b8)
    TB = ((TB + 7) // 8) * 8

    # Pad batch to a multiple of TB so every grid step sees a full tile
    # (unmasked stores); padded rows are sliced off below.
    B_pad = ((B + TB - 1) // TB) * TB
    x_p = jnp.pad(x, ((0, B_pad - B), (0, 0))) if B_pad != B else x
    grid = (B_pad // TB,)

    compiler_params = pltpu.CompilerParams(
        dimension_semantics=("parallel",))

    if out_dim == 1:
        out = pl.pallas_call(
            _linear_rowvec_kernel,
            out_shape=jax.ShapeDtypeStruct((B_pad, out_dim), x.dtype),
            grid_spec=pltpu.PrefetchScalarGridSpec(
                num_scalar_prefetch=0,
                grid=grid,
                in_specs=[
                    # streamed x tiles
                    pl.BlockSpec((TB, in_dim), lambda i: (i, 0)),
                    # resident weight row (no transpose needed)
                    pl.BlockSpec((1, in_dim), lambda i: (0, 0)),
                    # bias scalar lives in SMEM
                    pl.BlockSpec(memory_space=pltpu.MemorySpace.SMEM),
                ],
                out_specs=pl.BlockSpec((TB, out_dim), lambda i: (i, 0)),
            ),
            compiler_params=compiler_params,
        )(x_p, weight, bias)
    else:
        w_t = weight.T                     # (in_dim, out_dim), done once
        b2d = bias.reshape(1, out_dim)     # (1, out_dim)
        out = pl.pallas_call(
            _linear_mxu_kernel,
            out_shape=jax.ShapeDtypeStruct((B_pad, out_dim), x.dtype),
            grid_spec=pltpu.PrefetchScalarGridSpec(
                num_scalar_prefetch=0,
                grid=grid,
                in_specs=[
                    pl.BlockSpec((TB, in_dim), lambda i: (i, 0)),
                    pl.BlockSpec((in_dim, out_dim), lambda i: (0, 0)),
                    pl.BlockSpec((1, out_dim), lambda i: (0, 0)),
                ],
                out_specs=pl.BlockSpec((TB, out_dim), lambda i: (i, 0)),
            ),
            compiler_params=compiler_params,
        )(x_p, w_t, b2d)

    return out[:B]


def reference_forward(x, weight, bias):
    return x @ weight.T + bias[None, :]


if __name__ == "__main__":
    key = jax.random.PRNGKey(0)
    kx, kw, kb, kx2, kw2, kb2 = jax.random.split(key, 6)

    # --- test 1: module default shapes (113 -> 1), small batch ---
    batch = 8
    x = jax.random.normal(kx, (batch, INPUT_DIM), dtype=jnp.float32)
    weight = jax.random.normal(kw, (OUTPUT_DIM, INPUT_DIM), dtype=jnp.float32) * 0.05
    bias = jax.random.normal(kb, (OUTPUT_DIM,), dtype=jnp.float32) * 0.05

    out = jax.block_until_ready(linear_nn_forward(x, weight, bias))
    ref = reference_forward(x, weight, bias)
    assert out.shape == (batch, OUTPUT_DIM), out.shape
    assert jnp.allclose(out, ref, atol=1e-5, rtol=1e-5), \
        f"max err {jnp.max(jnp.abs(out - ref))}"

    # --- test 2: batch not divisible by the tile (exercises padding + multi-
    # tile parallel grid) with a small tile so several grid steps run ---
    batch2 = 1000
    x2 = jax.random.normal(kx2, (batch2, INPUT_DIM), dtype=jnp.float32)
    out2 = jax.block_until_ready(
        linear_nn_forward(x2, weight, bias, tb=128))
    ref2 = reference_forward(x2, weight, bias)
    assert out2.shape == (batch2, OUTPUT_DIM), out2.shape
    assert jnp.allclose(out2, ref2, atol=1e-4, rtol=1e-4), \
        f"max err {jnp.max(jnp.abs(out2 - ref2))}"

    # --- test 3: generic out_dim > 1 MXU fallback path ---
    out_dim3 = 4
    x3 = jax.random.normal(kx2, (16, INPUT_DIM), dtype=jnp.float32)
    w3 = jax.random.normal(kw2, (out_dim3, INPUT_DIM), dtype=jnp.float32) * 0.05
    b3 = jax.random.normal(kb2, (out_dim3,), dtype=jnp.float32) * 0.05
    out3 = jax.block_until_ready(linear_nn_forward(x3, w3, b3))
    ref3 = reference_forward(x3, w3, b3)
    assert out3.shape == (16, out_dim3), out3.shape
    assert jnp.allclose(out3, ref3, atol=1e-4, rtol=1e-4), \
        f"max err {jnp.max(jnp.abs(out3 - ref3))}"

    print("KERNEL_OK")
</pallas_src>

<mosaic_0001>
module attributes {stable_mosaic.version = 11 : i64} {
  func.func @_linear_rowvec_kernel(%arg0: i32, %arg1: memref<8x113xf32, #tpu.memory_space<vmem>>, %arg2: memref<1x113xf32, #tpu.memory_space<vmem>>, %arg3: memref<1xf32, #tpu.memory_space<smem>>, %arg4: memref<8x1xf32, #tpu.memory_space<vmem>>) attributes {dimension_semantics = [#tpu.dimension_semantics<parallel>], iteration_bounds = array<i64: 1>, scalar_prefetch = 0 : i64, scratch_operands = 0 : i64, tpu.core_type = #tpu.core_type<tc>, window_params = [{transform_indices = @transform_0, window_bounds = array<i64: 8, 113>}, {pipeline_mode = #tpu.pipeline_mode<synchronous>, transform_indices = @transform_1, window_bounds = array<i64: 1, 113>}, {transform_indices = @transform_2, window_bounds = array<i64: 1>}, {transform_indices = @transform_3, window_bounds = array<i64: 8, 1>}]} {
    %c0 = arith.constant 0 : index
    %c0_0 = arith.constant 0 : index
    %0 = vector.load %arg1[%c0, %c0_0] : memref<8x113xf32, #tpu.memory_space<vmem>>, vector<8x113xf32>
    %c0_1 = arith.constant 0 : index
    %c0_2 = arith.constant 0 : index
    %1 = vector.load %arg2[%c0_1, %c0_2] : memref<1x113xf32, #tpu.memory_space<vmem>>, vector<1x113xf32>
    %2 = vector.broadcast %1 : vector<1x113xf32> to vector<8x113xf32>
    %3 = arith.mulf %0, %2 : vector<8x113xf32>
    %cst = arith.constant dense<0.000000e+00> : vector<8xf32>
    %4 = vector.multi_reduction <add>, %3, %cst [1] : vector<8x113xf32> to vector<8xf32>
    %5 = vector.shape_cast %4 : vector<8xf32> to vector<8x1xf32>
    %c0_3 = arith.constant 0 : index
    %6 = memref.load %arg3[%c0_3] : memref<1xf32, #tpu.memory_space<smem>>
    %7 = vector.broadcast %6 : f32 to vector<8x1xf32>
    %8 = arith.addf %5, %7 : vector<8x1xf32>
    %c0_4 = arith.constant 0 : index
    %c0_5 = arith.constant 0 : index
    %9 = vector.load %arg4[%c0_4, %c0_5] : memref<8x1xf32, #tpu.memory_space<vmem>>, vector<8x1xf32>
    tpu.vector_store %arg4[%c0_4, %c0_5], %8 {strides = array<i32>} : memref<8x1xf32, #tpu.memory_space<vmem>>, vector<8x1xf32>,
    return
  }
  func.func @transform_0(%arg0: i32) -> (i32, i32) {
    %c0_i32 = arith.constant 0 : i32
    %c0_i32_0 = arith.constant 0 : i32
    return %arg0, %c0_i32 : i32, i32
  }
  func.func @transform_1(%arg0: i32) -> (i32, i32) {
    %c0_i32 = arith.constant 0 : i32
    %c0_i32_0 = arith.constant 0 : i32
    %c0_i32_1 = arith.constant 0 : i32
    return %c0_i32, %c0_i32_0 : i32, i32
  }
  func.func @transform_2(%arg0: i32) -> i32 {
    %c0_i32 = arith.constant 0 : i32
    %c0_i32_0 = arith.constant 0 : i32
    return %c0_i32 : i32
  }
  func.func @transform_3(%arg0: i32) -> (i32, i32) {
    %c0_i32 = arith.constant 0 : i32
    %c0_i32_0 = arith.constant 0 : i32
    return %arg0, %c0_i32 : i32, i32
  }
}

</mosaic_0001>

<llo_original>
// kernel: linear_nn_forward.1
$region0: #{linear_nn_forward.1}
  #allocation0 [shape = 'u32[]', space=smem, size = 0x4, offset = 0x4, fixed_abs, tag = 'smem constant byte address 0x4 - core index']
  #allocation1 [shape = 'u32[72,128]{1,0:T(1,128)}', space=vmem, size = 0x9000, scoped, tag = 'internal scratch']
  #allocation2 [shape = 'f32[1]{0:T(128)S(6)}', space=smem, size = 0x200, scoped, tag = 'scoped memory for linear_nn_forward.1']
  %s0 = inlined_call_operand.hbm [shape: f32[8,113], index: 0, kind: input, shape index: {}]
  %s1 = inlined_call_operand.vmem [shape: f32[1,113], index: 1, kind: input, shape index: {}]
  %s2 = inlined_call_operand.<no memory space> [shape: f32[1], index: 2, kind: input, shape index: {}]
  %s3 = inlined_call_operand.vmem [shape: f32[8,1], index: 3, kind: output, shape index: {}]
  %s4 = sld [smem:[#allocation0]]
  $region26: #{linear_nn_forward.1} parent=0
    _
  %s6 = ssub.s32 1, %s4
  %s7 = scalar_select 0, %s6, %s4
  %8 = sst [smem:[#allocation2]] %s2
  $region1: #{linear_nn_forward.1} parent=0
    #allocation3 [shape = 'u8[4096]{0}', space=vmem, size = 0x1000, scoped, tag = 'input window, operand 0, single buffered']
    #allocation4 [shape = 's32[1]{0}', space=sflag, size = 0x4, scoped, tag = 'scoped memory for linear_nn_forward.1']
    %9 = vsyncpa [#allocation4], 0
    // Predicated region
    $region2: #{linear_nn_forward.1} parent=1 // pred_check
      _
    $region3: #{linear_nn_forward.1} parent=1 // pred_check_branch
      %11 = sbr.rel (0) target = $region5
    $region4: #{linear_nn_forward.1} parent=1 // pred_region
      %13 = vsyncadd [#allocation4], 0
      %s15 = sshll.u32 %s0, 4
      %s16 = int_to_ptr.hbm [resolvable:$true] %s15
      %s17 = sshll.u32 [#allocation3], 4
      %s18 = int_to_ptr.vmem [resolvable:$true] %s17
      %20 = dma.hbm_to_vmem [thread:$0]  %s16, 128, %s18, [#allocation4]
    $region5: #{linear_nn_forward.1} parent=1 // pred_fallthru
      _
    // Predicated region
    $region6: #{linear_nn_forward.1} parent=1 // pred_check
      _
    $region7: #{linear_nn_forward.1} parent=1 // pred_check_branch
      %22 = sbr.rel (0) target = $region9
    $region8: #{linear_nn_forward.1} parent=1 // pred_region
      _
    $region9: #{linear_nn_forward.1} parent=1 // pred_fallthru
      _
    // Predicated region
    $region10: #{linear_nn_forward.1} parent=1 // pred_check
      _
    $region11: #{linear_nn_forward.1} parent=1 // pred_check_branch
      %24 = sbr.rel (0) target = $region13
    $region12: #{linear_nn_forward.1} parent=1 // pred_region
      _
    $region13: #{linear_nn_forward.1} parent=1 // pred_fallthru
      _
    // Predicated region
    $region14: #{linear_nn_forward.1} parent=1 // pred_check
      _
    $region15: #{linear_nn_forward.1} parent=1 // pred_check_branch
      %26 = sbr.rel (0) target = $region17
    $region16: #{linear_nn_forward.1} parent=1 // pred_region
      %28 = dma.done [#allocation4], 128
    $region17: #{linear_nn_forward.1} parent=1 // pred_fallthru
      _
    %v29 = vld [vmem:[#allocation3] sm:$0xff]
    %v30 = vld [vmem:[%s1] sm:$0x1]
    %v32 = vperm.slane %v30, 0
    %v34 = vmul.f32 %v29, %v32
    %vm35 = vcmask 924672
    %v36 = vsel %vm35, %v34, 0.0
    %37 = vadd.xlane.f32.xlu0 %v36
    %v38 = vpop.xlane.xlu0 %37
    %s39 = sld [smem:[#allocation2]]
    %v40 = vstv %s39
    %v41 = vadd.f32 %v38, %v40
    %vm42 = vcmask 7168
    %43 = vst.msk [vmem:[%s3] sm:$0xff] %vm42, %v41
    // Predicated region
    $region18: #{linear_nn_forward.1} parent=1 // pred_check
      _
    $region19: #{linear_nn_forward.1} parent=1 // pred_check_branch
      %45 = sbr.rel (0) target = $region21
    $region20: #{linear_nn_forward.1} parent=1 // pred_region
      _
    $region21: #{linear_nn_forward.1} parent=1 // pred_fallthru
      _
    // Predicated region
    $region22: #{linear_nn_forward.1} parent=1 // pred_check
      _
    $region23: #{linear_nn_forward.1} parent=1 // pred_check_branch
      %47 = sbr.rel (0) target = $region25
    $region24: #{linear_nn_forward.1} parent=1 // pred_region
      _
    $region25: #{linear_nn_forward.1} parent=1 // pred_fallthru
      _
    %48 = vsyncpa [#allocation4], 1

</llo_original>
